<compile_context>
chip_gen: v7x
topology: tpu7x:2x2x1
jax: 0.10.0
libtpu: 0.0.40
codegen_flags: <defaults>
</compile_context>

<pallas_src>
import functools

import jax
import jax.numpy as jnp
from jax.experimental import pallas as pl
from jax.experimental.pallas import tpu as pltpu


def _round_up(x: int, m: int) -> int:
    return ((x + m - 1) // m) * m


def _infonce_kernel(d_row_ref, a_row_ref, a_col_ref, d_col_ref, out_ref,
                    m_def, l_def, m_attr, l_attr,
                    *, inv_temp: float, b_actual: int, tb_col: int,
                    n_col_tiles: int, needs_mask: bool):
    j = pl.program_id(1)

    # ---- init running row-LSE state at the start of every row tile ---------
    @pl.when(j == 0)
    def _():
        m_def[...] = jnp.full_like(m_def, -jnp.inf)
        l_def[...] = jnp.zeros_like(l_def)
        m_attr[...] = jnp.full_like(m_attr, -jnp.inf)
        l_attr[...] = jnp.zeros_like(l_attr)

    # ---- similarity tiles on the MXU (NT form, no transpose copy) ----------
    nt = (((1,), (1,)), ((), ()))
    sim_def = jax.lax.dot_general(
        d_row_ref[...], a_col_ref[...], nt,
        preferred_element_type=jnp.float32) * inv_temp           # rows of sim
    sim_attr = jax.lax.dot_general(
        a_row_ref[...], d_col_ref[...], nt,
        preferred_element_type=jnp.float32) * inv_temp           # rows of sim.T

    if needs_mask:
        col_ids = j * tb_col + jax.lax.broadcasted_iota(
            jnp.int32, sim_def.shape, 1)
        valid = col_ids < b_actual
        neg = jnp.float32(-1e30)
        sim_def = jnp.where(valid, sim_def, neg)
        sim_attr = jnp.where(valid, sim_attr, neg)

    # ---- flash-style online logsumexp update --------------------------------
    def update(sim, m_ref, l_ref):
        m_new = jnp.maximum(m_ref[...], jnp.max(sim, axis=1, keepdims=True))
        alpha = jnp.exp(m_ref[...] - m_new)
        l_ref[...] = alpha * l_ref[...] + jnp.sum(
            jnp.exp(sim - m_new), axis=1, keepdims=True)
        m_ref[...] = m_new

    update(sim_def, m_def, l_def)
    update(sim_attr, m_attr, l_attr)

    # ---- finalize this row tile ---------------------------------------------
    @pl.when(j == n_col_tiles - 1)
    def _():
        lse_def = m_def[...] + jnp.log(l_def[...])
        lse_attr = m_attr[...] + jnp.log(l_attr[...])
        # Diagonal straight from the inputs: sim[i, i] = <d_i, a_i> / T.
        diag = jnp.sum(
            d_row_ref[...].astype(jnp.float32)
            * a_row_ref[...].astype(jnp.float32),
            axis=1, keepdims=True) * inv_temp
        out_ref[...] = lse_def + lse_attr - 2.0 * diag


def infonce_loss(definition_embeds: jax.Array,
                 attribute_embeds: jax.Array,
                 temperature: float = 0.07) -> jax.Array:
    """InfoNCE: symmetric cross-entropy over the (B, B) similarity matrix."""
    assert definition_embeds.shape == attribute_embeds.shape
    assert definition_embeds.ndim == 2
    b, d = definition_embeds.shape
    inv_temp = 1.0 / float(temperature)

    # Tile sizing: 256-multiples keep the v6e/v7x MXU (2x256x256) full and are
    # 128-aligned for v5e; tiny batches collapse to a single 8-aligned tile.
    tb = 256 if b >= 256 else _round_up(b, 8)
    b_pad = _round_up(b, tb)
    d_pad = _round_up(d, 128)          # pad the contraction dim for the MXU

    def pad(x):
        if b_pad == b and d_pad == d:
            return x
        return jnp.pad(x, ((0, b_pad - b), (0, d_pad - d)))

    d_p = pad(definition_embeds)
    a_p = pad(attribute_embeds)

    grid = (b_pad // tb, b_pad // tb)

    kernel = functools.partial(
        _infonce_kernel, inv_temp=inv_temp, b_actual=b, tb_col=tb,
        n_col_tiles=grid[1], needs_mask=(b_pad != b))

    row_spec = pl.BlockSpec((tb, d_pad), lambda i, j: (i, 0))
    col_spec = pl.BlockSpec((tb, d_pad), lambda i, j: (j, 0))

    itemsize = jnp.dtype(definition_embeds.dtype).itemsize
    per_row = pl.pallas_call(
        kernel,
        out_shape=jax.ShapeDtypeStruct((b_pad, 1), jnp.float32),
        grid_spec=pltpu.PrefetchScalarGridSpec(
            num_scalar_prefetch=0,
            grid=grid,
            in_specs=[row_spec, row_spec, col_spec, col_spec],
            out_specs=pl.BlockSpec((tb, 1), lambda i, j: (i, 0)),
            scratch_shapes=[pltpu.VMEM((tb, 1), jnp.float32)] * 4,
        ),
        compiler_params=pltpu.CompilerParams(
            dimension_semantics=("parallel", "arbitrary"),
            vmem_limit_bytes=32 * 1024 * 1024,
        ),
        cost_estimate=pl.CostEstimate(
            flops=4 * b_pad * b_pad * d_pad,
            transcendentals=2 * b_pad * b_pad,
            bytes_accessed=(2 * b_pad * d_pad * (1 + grid[0])) * itemsize
                           + 4 * b_pad,
        ),
    )(d_p, a_p, a_p, d_p)

    # per_row[i] = logsumexp(sim[i, :]) + logsumexp(sim[:, i]) - 2*sim[i, i]
    return jnp.sum(per_row[:b, 0]) / (2.0 * b)


def _reference(def_e, attr_e, temperature=0.07):
    sim = (def_e.astype(jnp.float32) @ attr_e.astype(jnp.float32).T) / temperature
    labels = jnp.arange(sim.shape[0])

    def ce(logits):
        lse = jax.nn.logsumexp(logits, axis=-1)
        return jnp.mean(lse - logits[jnp.arange(logits.shape[0]), labels])

    return (ce(sim) + ce(sim.T)) / 2.0


if __name__ == "__main__":
    key = jax.random.PRNGKey(0)

    # Test 1: small shapes consistent with the module (batch=8, hidden=32).
    k1, k2 = jax.random.split(key)
    B, D = 8, 32
    definition_embeds = jax.random.normal(k1, (B, D), dtype=jnp.float32)
    attribute_embeds = jax.random.normal(k2, (B, D), dtype=jnp.float32)

    loss = infonce_loss(definition_embeds, attribute_embeds, temperature=0.07)
    loss = jax.block_until_ready(loss)
    ref = _reference(definition_embeds, attribute_embeds, temperature=0.07)
    assert jnp.allclose(loss, ref, atol=1e-4, rtol=1e-4), (loss, ref)

    # Test 2: exercises the multi-tile grid, edge-tile masking and the
    # parallel row axis (grid (2, 2) with tb=256, b_pad=512 > B=384).
    k3, k4 = jax.random.split(k2)
    B2, D2 = 384, 64
    de2 = jax.random.normal(k3, (B2, D2), dtype=jnp.float32)
    ae2 = jax.random.normal(k4, (B2, D2), dtype=jnp.float32)
    de2 = de2 / jnp.linalg.norm(de2, axis=-1, keepdims=True)
    ae2 = ae2 / jnp.linalg.norm(ae2, axis=-1, keepdims=True)
    loss2 = jax.block_until_ready(infonce_loss(de2, ae2, temperature=0.07))
    ref2 = _reference(de2, ae2, temperature=0.07)
    assert jnp.allclose(loss2, ref2, atol=1e-3, rtol=1e-4), (loss2, ref2)

    print("KERNEL_OK")
</pallas_src>

<mosaic_0001>
module attributes {stable_mosaic.version = 11 : i64} {
  func.func @_infonce_kernel(%arg0: i32, %arg1: i32, %arg2: memref<8x128xf32, #tpu.memory_space<vmem>>, %arg3: memref<8x128xf32, #tpu.memory_space<vmem>>, %arg4: memref<8x128xf32, #tpu.memory_space<vmem>>, %arg5: memref<8x128xf32, #tpu.memory_space<vmem>>, %arg6: memref<8x1xf32, #tpu.memory_space<vmem>>, %arg7: memref<8x1xf32, #tpu.memory_space<vmem>>, %arg8: memref<8x1xf32, #tpu.memory_space<vmem>>, %arg9: memref<8x1xf32, #tpu.memory_space<vmem>>, %arg10: memref<8x1xf32, #tpu.memory_space<vmem>>) attributes {dimension_semantics = [#tpu.dimension_semantics<parallel>, #tpu.dimension_semantics<arbitrary>], iteration_bounds = array<i64: 1, 1>, scalar_prefetch = 0 : i64, scratch_operands = 4 : i64, tpu.core_type = #tpu.core_type<tc>, window_params = [{transform_indices = @transform_0, window_bounds = array<i64: 8, 128>}, {transform_indices = @transform_1, window_bounds = array<i64: 8, 128>}, {transform_indices = @transform_2, window_bounds = array<i64: 8, 128>}, {transform_indices = @transform_3, window_bounds = array<i64: 8, 128>}, {transform_indices = @transform_4, window_bounds = array<i64: 8, 1>}]} {
    %c0_i32 = arith.constant 0 : i32
    %0 = arith.cmpi eq, %arg1, %c0_i32 : i32
    %1 = arith.extui %0 : i1 to i32
    %c0_i32_0 = arith.constant 0 : i32
    %2 = arith.cmpi ne, %1, %c0_i32_0 : i32
    scf.if %2 {
      %cst_37 = arith.constant 0xFF800000 : f32
      %50 = vector.broadcast %cst_37 : f32 to vector<8x1xf32>
      %c0_38 = arith.constant 0 : index
      %c0_39 = arith.constant 0 : index
      %51 = vector.load %arg7[%c0_38, %c0_39] : memref<8x1xf32, #tpu.memory_space<vmem>>, vector<8x1xf32>
      tpu.vector_store %arg7[%c0_38, %c0_39], %50 {strides = array<i32>} : memref<8x1xf32, #tpu.memory_space<vmem>>, vector<8x1xf32>,
      %cst_40 = arith.constant 0.000000e+00 : f32
      %52 = vector.broadcast %cst_40 : f32 to vector<8x1xf32>
      %c0_41 = arith.constant 0 : index
      %c0_42 = arith.constant 0 : index
      %53 = vector.load %arg8[%c0_41, %c0_42] : memref<8x1xf32, #tpu.memory_space<vmem>>, vector<8x1xf32>
      tpu.vector_store %arg8[%c0_41, %c0_42], %52 {strides = array<i32>} : memref<8x1xf32, #tpu.memory_space<vmem>>, vector<8x1xf32>,
      %cst_43 = arith.constant 0xFF800000 : f32
      %54 = vector.broadcast %cst_43 : f32 to vector<8x1xf32>
      %c0_44 = arith.constant 0 : index
      %c0_45 = arith.constant 0 : index
      %55 = vector.load %arg9[%c0_44, %c0_45] : memref<8x1xf32, #tpu.memory_space<vmem>>, vector<8x1xf32>
      tpu.vector_store %arg9[%c0_44, %c0_45], %54 {strides = array<i32>} : memref<8x1xf32, #tpu.memory_space<vmem>>, vector<8x1xf32>,
      %cst_46 = arith.constant 0.000000e+00 : f32
      %56 = vector.broadcast %cst_46 : f32 to vector<8x1xf32>
      %c0_47 = arith.constant 0 : index
      %c0_48 = arith.constant 0 : index
      %57 = vector.load %arg10[%c0_47, %c0_48] : memref<8x1xf32, #tpu.memory_space<vmem>>, vector<8x1xf32>
      tpu.vector_store %arg10[%c0_47, %c0_48], %56 {strides = array<i32>} : memref<8x1xf32, #tpu.memory_space<vmem>>, vector<8x1xf32>,
    } else {
    }
    %c0 = arith.constant 0 : index
    %c0_1 = arith.constant 0 : index
    %3 = vector.load %arg2[%c0, %c0_1] : memref<8x128xf32, #tpu.memory_space<vmem>>, vector<8x128xf32>
    %c0_2 = arith.constant 0 : index
    %c0_3 = arith.constant 0 : index
    %4 = vector.load %arg4[%c0_2, %c0_3] : memref<8x128xf32, #tpu.memory_space<vmem>>, vector<8x128xf32>
    %cst = arith.constant dense<0.000000e+00> : vector<8x8xf32>
    %5 = tpu.matmul %3, %4, %cst {dimension_numbers = #tpu.dot_dimension_numbers<[1], [1], [0], [0], [0, 0, 1, 0], [], []>} : vector<8x128xf32>, vector<8x128xf32>, vector<8x8xf32> -> vector<8x8xf32>
    %cst_4 = arith.constant 14.2857141 : f32
    %6 = vector.broadcast %cst_4 : f32 to vector<8x8xf32>
    %7 = arith.mulf %5, %6 : vector<8x8xf32>
    %c0_5 = arith.constant 0 : index
    %c0_6 = arith.constant 0 : index
    %8 = vector.load %arg3[%c0_5, %c0_6] : memref<8x128xf32, #tpu.memory_space<vmem>>, vector<8x128xf32>
    %c0_7 = arith.constant 0 : index
    %c0_8 = arith.constant 0 : index
    %9 = vector.load %arg5[%c0_7, %c0_8] : memref<8x128xf32, #tpu.memory_space<vmem>>, vector<8x128xf32>
    %cst_9 = arith.constant dense<0.000000e+00> : vector<8x8xf32>
    %10 = tpu.matmul %8, %9, %cst_9 {dimension_numbers = #tpu.dot_dimension_numbers<[1], [1], [0], [0], [0, 0, 1, 0], [], []>} : vector<8x128xf32>, vector<8x128xf32>, vector<8x8xf32> -> vector<8x8xf32>
    %cst_10 = arith.constant 14.2857141 : f32
    %11 = vector.broadcast %cst_10 : f32 to vector<8x8xf32>
    %12 = arith.mulf %10, %11 : vector<8x8xf32>
    %c0_11 = arith.constant 0 : index
    %c0_12 = arith.constant 0 : index
    %13 = vector.load %arg7[%c0_11, %c0_12] : memref<8x1xf32, #tpu.memory_space<vmem>>, vector<8x1xf32>
    %cst_13 = arith.constant dense<0xFF800000> : vector<8xf32>
    %14 = vector.multi_reduction <maximumf>, %7, %cst_13 [1] : vector<8x8xf32> to vector<8xf32>
    %15 = vector.shape_cast %14 : vector<8xf32> to vector<8x1xf32>
    %16 = arith.maximumf %13, %15 : vector<8x1xf32>
    %c0_14 = arith.constant 0 : index
    %c0_15 = arith.constant 0 : index
    %17 = vector.load %arg7[%c0_14, %c0_15] : memref<8x1xf32, #tpu.memory_space<vmem>>, vector<8x1xf32>
    %18 = arith.subf %17, %16 : vector<8x1xf32>
    %19 = math.exp %18 : vector<8x1xf32>
    %c0_16 = arith.constant 0 : index
    %c0_17 = arith.constant 0 : index
    %20 = vector.load %arg8[%c0_16, %c0_17] : memref<8x1xf32, #tpu.memory_space<vmem>>, vector<8x1xf32>
    %21 = arith.mulf %19, %20 : vector<8x1xf32>
    %22 = vector.broadcast %16 : vector<8x1xf32> to vector<8x8xf32>
    %23 = arith.subf %7, %22 : vector<8x8xf32>
    %24 = math.exp %23 : vector<8x8xf32>
    %cst_18 = arith.constant dense<0.000000e+00> : vector<8xf32>
    %25 = vector.multi_reduction <add>, %24, %cst_18 [1] : vector<8x8xf32> to vector<8xf32>
    %26 = vector.shape_cast %25 : vector<8xf32> to vector<8x1xf32>
    %27 = arith.addf %21, %26 : vector<8x1xf32>
    %c0_19 = arith.constant 0 : index
    %c0_20 = arith.constant 0 : index
    %28 = vector.load %arg8[%c0_19, %c0_20] : memref<8x1xf32, #tpu.memory_space<vmem>>, vector<8x1xf32>
    tpu.vector_store %arg8[%c0_19, %c0_20], %27 {strides = array<i32>} : memref<8x1xf32, #tpu.memory_space<vmem>>, vector<8x1xf32>,
    %c0_21 = arith.constant 0 : index
    %c0_22 = arith.constant 0 : index
    %29 = vector.load %arg7[%c0_21, %c0_22] : memref<8x1xf32, #tpu.memory_space<vmem>>, vector<8x1xf32>
    tpu.vector_store %arg7[%c0_21, %c0_22], %16 {strides = array<i32>} : memref<8x1xf32, #tpu.memory_space<vmem>>, vector<8x1xf32>,
    %c0_23 = arith.constant 0 : index
    %c0_24 = arith.constant 0 : index
    %30 = vector.load %arg9[%c0_23, %c0_24] : memref<8x1xf32, #tpu.memory_space<vmem>>, vector<8x1xf32>
    %cst_25 = arith.constant dense<0xFF800000> : vector<8xf32>
    %31 = vector.multi_reduction <maximumf>, %12, %cst_25 [1] : vector<8x8xf32> to vector<8xf32>
    %32 = vector.shape_cast %31 : vector<8xf32> to vector<8x1xf32>
    %33 = arith.maximumf %30, %32 : vector<8x1xf32>
    %c0_26 = arith.constant 0 : index
    %c0_27 = arith.constant 0 : index
    %34 = vector.load %arg9[%c0_26, %c0_27] : memref<8x1xf32, #tpu.memory_space<vmem>>, vector<8x1xf32>
    %35 = arith.subf %34, %33 : vector<8x1xf32>
    %36 = math.exp %35 : vector<8x1xf32>
    %c0_28 = arith.constant 0 : index
    %c0_29 = arith.constant 0 : index
    %37 = vector.load %arg10[%c0_28, %c0_29] : memref<8x1xf32, #tpu.memory_space<vmem>>, vector<8x1xf32>
    %38 = arith.mulf %36, %37 : vector<8x1xf32>
    %39 = vector.broadcast %33 : vector<8x1xf32> to vector<8x8xf32>
    %40 = arith.subf %12, %39 : vector<8x8xf32>
    %41 = math.exp %40 : vector<8x8xf32>
    %cst_30 = arith.constant dense<0.000000e+00> : vector<8xf32>
    %42 = vector.multi_reduction <add>, %41, %cst_30 [1] : vector<8x8xf32> to vector<8xf32>
    %43 = vector.shape_cast %42 : vector<8xf32> to vector<8x1xf32>
    %44 = arith.addf %38, %43 : vector<8x1xf32>
    %c0_31 = arith.constant 0 : index
    %c0_32 = arith.constant 0 : index
    %45 = vector.load %arg10[%c0_31, %c0_32] : memref<8x1xf32, #tpu.memory_space<vmem>>, vector<8x1xf32>
    tpu.vector_store %arg10[%c0_31, %c0_32], %44 {strides = array<i32>} : memref<8x1xf32, #tpu.memory_space<vmem>>, vector<8x1xf32>,
    %c0_33 = arith.constant 0 : index
    %c0_34 = arith.constant 0 : index
    %46 = vector.load %arg9[%c0_33, %c0_34] : memref<8x1xf32, #tpu.memory_space<vmem>>, vector<8x1xf32>
    tpu.vector_store %arg9[%c0_33, %c0_34], %33 {strides = array<i32>} : memref<8x1xf32, #tpu.memory_space<vmem>>, vector<8x1xf32>,
    %c0_i32_35 = arith.constant 0 : i32
    %47 = arith.cmpi eq, %arg1, %c0_i32_35 : i32
    %48 = arith.extui %47 : i1 to i32
    %c0_i32_36 = arith.constant 0 : i32
    %49 = arith.cmpi ne, %48, %c0_i32_36 : i32
    scf.if %49 {
      %c0_37 = arith.constant 0 : index
      %c0_38 = arith.constant 0 : index
      %50 = vector.load %arg7[%c0_37, %c0_38] : memref<8x1xf32, #tpu.memory_space<vmem>>, vector<8x1xf32>
      %c0_39 = arith.constant 0 : index
      %c0_40 = arith.constant 0 : index
      %51 = vector.load %arg8[%c0_39, %c0_40] : memref<8x1xf32, #tpu.memory_space<vmem>>, vector<8x1xf32>
      %52 = math.log %51 : vector<8x1xf32>
      %53 = arith.addf %50, %52 : vector<8x1xf32>
      %c0_41 = arith.constant 0 : index
      %c0_42 = arith.constant 0 : index
      %54 = vector.load %arg9[%c0_41, %c0_42] : memref<8x1xf32, #tpu.memory_space<vmem>>, vector<8x1xf32>
      %c0_43 = arith.constant 0 : index
      %c0_44 = arith.constant 0 : index
      %55 = vector.load %arg10[%c0_43, %c0_44] : memref<8x1xf32, #tpu.memory_space<vmem>>, vector<8x1xf32>
      %56 = math.log %55 : vector<8x1xf32>
      %57 = arith.addf %54, %56 : vector<8x1xf32>
      %c0_45 = arith.constant 0 : index
      %c0_46 = arith.constant 0 : index
      %58 = vector.load %arg2[%c0_45, %c0_46] : memref<8x128xf32, #tpu.memory_space<vmem>>, vector<8x128xf32>
      %c0_47 = arith.constant 0 : index
      %c0_48 = arith.constant 0 : index
      %59 = vector.load %arg3[%c0_47, %c0_48] : memref<8x128xf32, #tpu.memory_space<vmem>>, vector<8x128xf32>
      %60 = arith.mulf %58, %59 : vector<8x128xf32>
      %cst_49 = arith.constant dense<0.000000e+00> : vector<8xf32>
      %61 = vector.multi_reduction <add>, %60, %cst_49 [1] : vector<8x128xf32> to vector<8xf32>
      %62 = vector.shape_cast %61 : vector<8xf32> to vector<8x1xf32>
      %cst_50 = arith.constant 14.2857141 : f32
      %63 = vector.broadcast %cst_50 : f32 to vector<8x1xf32>
      %64 = arith.mulf %62, %63 : vector<8x1xf32>
      %65 = arith.addf %53, %57 : vector<8x1xf32>
      %cst_51 = arith.constant 2.000000e+00 : f32
      %66 = vector.broadcast %cst_51 : f32 to vector<8x1xf32>
      %67 = arith.mulf %66, %64 : vector<8x1xf32>
      %68 = arith.subf %65, %67 : vector<8x1xf32>
      %c0_52 = arith.constant 0 : index
      %c0_53 = arith.constant 0 : index
      %69 = vector.load %arg6[%c0_52, %c0_53] : memref<8x1xf32, #tpu.memory_space<vmem>>, vector<8x1xf32>
      tpu.vector_store %arg6[%c0_52, %c0_53], %68 {strides = array<i32>} : memref<8x1xf32, #tpu.memory_space<vmem>>, vector<8x1xf32>,
    } else {
    }
    return
  }
  func.func @transform_0(%arg0: i32, %arg1: i32) -> (i32, i32) {
    %c0_i32 = arith.constant 0 : i32
    %c0_i32_0 = arith.constant 0 : i32
    return %arg0, %c0_i32 : i32, i32
  }
  func.func @transform_1(%arg0: i32, %arg1: i32) -> (i32, i32) {
    %c0_i32 = arith.constant 0 : i32
    %c0_i32_0 = arith.constant 0 : i32
    return %arg0, %c0_i32 : i32, i32
  }
  func.func @transform_2(%arg0: i32, %arg1: i32) -> (i32, i32) {
    %c0_i32 = arith.constant 0 : i32
    %c0_i32_0 = arith.constant 0 : i32
    return %arg1, %c0_i32 : i32, i32
  }
  func.func @transform_3(%arg0: i32, %arg1: i32) -> (i32, i32) {
    %c0_i32 = arith.constant 0 : i32
    %c0_i32_0 = arith.constant 0 : i32
    return %arg1, %c0_i32 : i32, i32
  }
  func.func @transform_4(%arg0: i32, %arg1: i32) -> (i32, i32) {
    %c0_i32 = arith.constant 0 : i32
    %c0_i32_0 = arith.constant 0 : i32
    return %arg0, %c0_i32 : i32, i32
  }
}

</mosaic_0001>

<llo_original>
// kernel: tpu_custom_call.1
$region0: #{tpu_custom_call.1}
  #allocation0 [shape = 'u32[]', space=smem, size = 0x4, offset = 0x4, fixed_abs, tag = 'smem constant byte address 0x4 - core index']
  #allocation1 [shape = 'u32[144,128]{1,0:T(1,128)}', space=vmem, size = 0x12000, scoped, tag = 'internal scratch']
  #allocation2 [shape = 'f32[8,1]{1,0:T(8,128)}', space=vmem, size = 0x1000, scoped, tag = 'scratch operand']
  #allocation3 [shape = 'f32[8,1]{1,0:T(8,128)}', space=vmem, size = 0x1000, scoped, tag = 'scratch operand']
  #allocation4 [shape = 'f32[8,1]{1,0:T(8,128)}', space=vmem, size = 0x1000, scoped, tag = 'scratch operand']
  #allocation5 [shape = 'f32[8,1]{1,0:T(8,128)}', space=vmem, size = 0x1000, scoped, tag = 'scratch operand']
  %s0 = inlined_call_operand.hbm [shape: f32[8,128], index: 0, kind: input, shape index: {}]
  %s1 = inlined_call_operand.hbm [shape: f32[8,128], index: 1, kind: input, shape index: {}]
  %s2 = inlined_call_operand.hbm [shape: f32[8,128], index: 2, kind: input, shape index: {}]
  %s3 = inlined_call_operand.vmem [shape: f32[8,128], index: 3, kind: input, shape index: {}]
  %s4 = inlined_call_operand.vmem [shape: f32[8,1], index: 4, kind: output, shape index: {}]
  %s5 = sld [smem:[#allocation0]]
  $region46: #{tpu_custom_call.1} parent=0
    _
  %s7 = ssub.s32 1, %s5
  %s8 = scalar_select 0, %s7, %s5
  $region1: #{tpu_custom_call.1} parent=0
    #allocation6 [shape = 'u8[4096]{0}', space=vmem, size = 0x1000, scoped, tag = 'input window, operand 0, single buffered']
    #allocation7 [shape = 's32[1]{0}', space=sflag, size = 0x4, scoped, tag = 'scoped memory for tpu_custom_call.1']
    #allocation8 [shape = 'u8[4096]{0}', space=vmem, size = 0x1000, scoped, tag = 'input window, operand 1, single buffered']
    #allocation9 [shape = 's32[1]{0}', space=sflag, size = 0x4, scoped, tag = 'scoped memory for tpu_custom_call.1']
    #allocation10 [shape = 'u8[4096]{0}', space=vmem, size = 0x1000, scoped, tag = 'input window, operand 2, single buffered']
    %9 = vsyncpa [#allocation7], 0
    %10 = vsyncpa [#allocation9], 0
    // Predicated region
    $region2: #{tpu_custom_call.1} parent=1 // pred_check
      _
    $region3: #{tpu_custom_call.1} parent=1 // pred_check_branch
      %12 = sbr.rel (0) target = $region5
    $region4: #{tpu_custom_call.1} parent=1 // pred_region
      %s14 = ssub.s32 128, 128
      %15 = vsyncadd [#allocation7], %s14
      %s17 = sshll.u32 [#allocation6], 4
      %s18 = int_to_ptr.vmem [resolvable:$true] %s17
      %20 = dma.hbm_to_vmem [thread:$0]  %s0, 128, %s18, [#allocation7]
    $region5: #{tpu_custom_call.1} parent=1 // pred_fallthru
      _
    // Predicated region
    $region6: #{tpu_custom_call.1} parent=1 // pred_check
      _
    $region7: #{tpu_custom_call.1} parent=1 // pred_check_branch
      %22 = sbr.rel (0) target = $region9
    $region8: #{tpu_custom_call.1} parent=1 // pred_region
      %s24 = ssub.s32 128, 128
      %25 = vsyncadd [#allocation9], %s24
      %s27 = sshll.u32 [#allocation8], 4
      %s28 = int_to_ptr.vmem [resolvable:$true] %s27
      %30 = dma.hbm_to_vmem [thread:$0]  %s1, 128, %s28, [#allocation9]
    $region9: #{tpu_custom_call.1} parent=1 // pred_fallthru
      _
    // Predicated region
    $region10: #{tpu_custom_call.1} parent=1 // pred_check
      _
    $region11: #{tpu_custom_call.1} parent=1 // pred_check_branch
      %32 = sbr.rel (0) target = $region13
    $region12: #{tpu_custom_call.1} parent=1 // pred_region
      %s34 = ssub.s32 128, 128
      %35 = vsyncadd [#allocation9], %s34
      %s37 = sshll.u32 [#allocation10], 4
      %s38 = int_to_ptr.vmem [resolvable:$true] %s37
      %40 = dma.hbm_to_vmem [thread:$0]  %s2, 128, %s38, [#allocation9]
    $region13: #{tpu_custom_call.1} parent=1 // pred_fallthru
      _
    // Predicated region
    $region14: #{tpu_custom_call.1} parent=1 // pred_check
      _
    $region15: #{tpu_custom_call.1} parent=1 // pred_check_branch
      %42 = sbr.rel (0) target = $region17
    $region16: #{tpu_custom_call.1} parent=1 // pred_region
      _
    $region17: #{tpu_custom_call.1} parent=1 // pred_fallthru
      _
    // Predicated region
    $region18: #{tpu_custom_call.1} parent=1 // pred_check
      _
    $region19: #{tpu_custom_call.1} parent=1 // pred_check_branch
      %44 = sbr.rel (0) target = $region21
    $region20: #{tpu_custom_call.1} parent=1 // pred_region
      %45 = dma.done [#allocation7], 128
    $region21: #{tpu_custom_call.1} parent=1 // pred_fallthru
      _
    // Predicated region
    $region22: #{tpu_custom_call.1} parent=1 // pred_check
      _
    $region23: #{tpu_custom_call.1} parent=1 // pred_check_branch
      %47 = sbr.rel (0) target = $region25
    $region24: #{tpu_custom_call.1} parent=1 // pred_region
      %48 = dma.done [#allocation9], 128
    $region25: #{tpu_custom_call.1} parent=1 // pred_fallthru
      _
    // Predicated region
    $region26: #{tpu_custom_call.1} parent=1 // pred_check
      _
    $region27: #{tpu_custom_call.1} parent=1 // pred_check_branch
      %50 = sbr.rel (0) target = $region29
    $region28: #{tpu_custom_call.1} parent=1 // pred_region
      %51 = dma.done [#allocation9], 128
    $region29: #{tpu_custom_call.1} parent=1 // pred_fallthru
      _
    %p52 = scmp.eq.s32.totalorder 0, 0
    // Predicated region
    $region30: #{tpu_custom_call.1} parent=1 // pred_check
      %p53 = pneg %p52
    $region31: #{tpu_custom_call.1} parent=1 // pred_check_branch
      %55 = sbr.rel (%p53) target = $region33
    $region32: #{tpu_custom_call.1} parent=1 // pred_region
      %vm56 = vcmask 7168
      %57 = vst.msk [vmem:[#allocation2] sm:$0xff] %vm56, -inf
      %58 = vst.msk [vmem:[#allocation3] sm:$0xff] %vm56, 0.0
      %59 = vst.msk [vmem:[#allocation4] sm:$0xff] %vm56, -inf
      %60 = vst.msk [vmem:[#allocation5] sm:$0xff] %vm56, 0.0
    $region33: #{tpu_custom_call.1} parent=1 // pred_fallthru
      _
    %v61 = vld [vmem:[#allocation6] sm:$0xff]
    %v62 = vld [vmem:[#allocation10] sm:$0xff]
    %63 = vmatprep.subr.mxu0 0.0
    %64 = vmatpush1.xpose.msra.mxu0 %v62
    %65 = vmatprep.subr.mxu0 0.0
    %66 = vmatpush1.xpose.msra.mxu0 0.0
    %67 = vmatprep.subr.mxu0 0.0
    %68 = vmatpush1.xpose.msra.mxu0 0.0
    %69 = vmatprep.subr.mxu0 0.0
    %70 = vmatpush1.xpose.msra.mxu0 0.0
    %71 = vmatprep.subr.mxu0 0.0
    %72 = vmatpush1.xpose.msra.mxu0 0.0
    %73 = vmatprep.subr.mxu0 0.0
    %74 = vmatpush1.xpose.msra.mxu0 0.0
    %75 = vmatprep.subr.mxu0 0.0
    %76 = vmatpush1.xpose.msra.mxu0 0.0
    %77 = vmatprep.subr.mxu0 0.0
    %78 = vmatpush1.xpose.msra.mxu0 0.0
    %79 = vmatprep.subr.mxu0 0.0
    %80 = vmatpush1.xpose.msra.mxu0 0.0
    %81 = vmatprep.subr.mxu0 0.0
    %82 = vmatpush1.xpose.msra.mxu0 0.0
    %83 = vmatprep.subr.mxu0 0.0
    %84 = vmatpush1.xpose.msra.mxu0 0.0
    %85 = vmatprep.subr.mxu0 0.0
    %86 = vmatpush1.xpose.msra.mxu0 0.0
    %87 = vmatprep.subr.mxu0 0.0
    %88 = vmatpush1.xpose.msra.mxu0 0.0
    %89 = vmatprep.subr.mxu0 0.0
    %90 = vmatpush1.xpose.msra.mxu0 0.0
    %91 = vmatprep.subr.mxu0 0.0
    %92 = vmatpush1.xpose.msra.mxu0 0.0
    %93 = vmatprep.subr.mxu0 0.0
    %94 = vmatpush1.xpose.msra.mxu0 0.0
    %95 = vmatprep.subr.mxu0 0.0
    %96 = vmatpush1.xpose.msra.mxu0 0.0
    %97 = vmatprep.subr.mxu0 0.0
    %98 = vmatpush1.xpose.msra.mxu0 0.0
    %99 = vmatprep.subr.mxu0 0.0
    %100 = vmatpush1.xpose.msra.mxu0 0.0
    %101 = vmatprep.subr.mxu0 0.0
    %102 = vmatpush1.xpose.msra.mxu0 0.0
    %103 = vmatprep.subr.mxu0 0.0
    %104 = vmatpush1.xpose.msra.mxu0 0.0
    %105 = vmatprep.subr.mxu0 0.0
    %106 = vmatpush1.xpose.msra.mxu0 0.0
    %107 = vmatprep.subr.mxu0 0.0
    %108 = vmatpush1.xpose.msra.mxu0 0.0
    %109 = vmatprep.subr.mxu0 0.0
    %110 = vmatpush1.xpose.msra.mxu0 0.0
    %111 = vmatprep.subr.mxu0 0.0
    %112 = vmatpush1.xpose.msra.mxu0 0.0
    %113 = vmatprep.subr.mxu0 0.0
    %114 = vmatpush1.xpose.msra.mxu0 0.0
    %115 = vmatprep.subr.mxu0 0.0
    %116 = vmatpush1.xpose.msra.mxu0 0.0
    %117 = vmatprep.subr.mxu0 0.0
    %118 = vmatpush1.xpose.msra.mxu0 0.0
    %119 = vmatprep.subr.mxu0 0.0
    %120 = vmatpush1.xpose.msra.mxu0 0.0
    %121 = vmatprep.subr.mxu0 0.0
    %122 = vmatpush1.xpose.msra.mxu0 0.0
    %123 = vmatprep.subr.mxu0 0.0
    %124 = vmatpush1.xpose.msra.mxu0 0.0
    %125 = vmatprep.subr.mxu0 0.0
    %126 = vmatpush1.xpose.msra.mxu0 0.0
    %127 = vmatprep.mubr.f32.mxu0 0.0
    %128 = vmatmul.mubr.f32.gmra.mrb[0].mxu0 %v61
    %v129 = vpop.f32.mrb[0].mxu0
    %v130 = vadd.f32 0.0, %v129
    %v131 = vpop.f32.mrb[0].mxu0
    %132 = vdwg.mxu0
    %v133 = vmul.f32 %v130, 14.285714
    %v134 = vld [vmem:[#allocation8] sm:$0xff]
    %v135 = vld [vmem:[%s3] sm:$0xff]
    %136 = vmatprep.subr.mxu0 0.0
    %137 = vmatpush1.xpose.msra.mxu0 %v135
    %138 = vmatprep.subr.mxu0 0.0
    %139 = vmatpush1.xpose.msra.mxu0 0.0
    %140 = vmatprep.subr.mxu0 0.0
    %141 = vmatpush1.xpose.msra.mxu0 0.0
    %142 = vmatprep.subr.mxu0 0.0
    %143 = vmatpush1.xpose.msra.mxu0 0.0
    %144 = vmatprep.subr.mxu0 0.0
    %145 = vmatpush1.xpose.msra.mxu0 0.0
    %146 = vmatprep.subr.mxu0 0.0
    %147 = vmatpush1.xpose.msra.mxu0 0.0
    %148 = vmatprep.subr.mxu0 0.0
    %149 = vmatpush1.xpose.msra.mxu0 0.0
    %150 = vmatprep.subr.mxu0 0.0
    %151 = vmatpush1.xpose.msra.mxu0 0.0
    %152 = vmatprep.subr.mxu0 0.0
    %153 = vmatpush1.xpose.msra.mxu0 0.0
    %154 = vmatprep.subr.mxu0 0.0
    %155 = vmatpush1.xpose.msra.mxu0 0.0
    %156 = vmatprep.subr.mxu0 0.0
    %157 = vmatpush1.xpose.msra.mxu0 0.0
    %158 = vmatprep.subr.mxu0 0.0
    %159 = vmatpush1.xpose.msra.mxu0 0.0
    %160 = vmatprep.subr.mxu0 0.0
    %161 = vmatpush1.xpose.msra.mxu0 0.0
    %162 = vmatprep.subr.mxu0 0.0
    %163 = vmatpush1.xpose.msra.mxu0 0.0
    %164 = vmatprep.subr.mxu0 0.0
    %165 = vmatpush1.xpose.msra.mxu0 0.0
    %166 = vmatprep.subr.mxu0 0.0
    %167 = vmatpush1.xpose.msra.mxu0 0.0
    %168 = vmatprep.subr.mxu0 0.0
    %169 = vmatpush1.xpose.msra.mxu0 0.0
    %170 = vmatprep.subr.mxu0 0.0
    %171 = vmatpush1.xpose.msra.mxu0 0.0
    %172 = vmatprep.subr.mxu0 0.0
    %173 = vmatpush1.xpose.msra.mxu0 0.0
    %174 = vmatprep.subr.mxu0 0.0
    %175 = vmatpush1.xpose.msra.mxu0 0.0
    %176 = vmatprep.subr.mxu0 0.0
    %177 = vmatpush1.xpose.msra.mxu0 0.0
    %178 = vmatprep.subr.mxu0 0.0
    %179 = vmatpush1.xpose.msra.mxu0 0.0
    %180 = vmatprep.subr.mxu0 0.0
    %181 = vmatpush1.xpose.msra.mxu0 0.0
    %182 = vmatprep.subr.mxu0 0.0
    %183 = vmatpush1.xpose.msra.mxu0 0.0
    %184 = vmatprep.subr.mxu0 0.0
    %185 = vmatpush1.xpose.msra.mxu0 0.0
    %186 = vmatprep.subr.mxu0 0.0
    %187 = vmatpush1.xpose.msra.mxu0 0.0
    %188 = vmatprep.subr.mxu0 0.0
    %189 = vmatpush1.xpose.msra.mxu0 0.0
    %190 = vmatprep.subr.mxu0 0.0
    %191 = vmatpush1.xpose.msra.mxu0 0.0
    %192 = vmatprep.subr.mxu0 0.0
    %193 = vmatpush1.xpose.msra.mxu0 0.0
    %194 = vmatprep.subr.mxu0 0.0
    %195 = vmatpush1.xpose.msra.mxu0 0.0
    %196 = vmatprep.subr.mxu0 0.0
    %197 = vmatpush1.xpose.msra.mxu0 0.0
    %198 = vmatprep.subr.mxu0 0.0
    %199 = vmatpush1.xpose.msra.mxu0 0.0
    %200 = vmatprep.mubr.f32.mxu0 0.0
    %201 = vmatmul.mubr.f32.gmra.mrb[0].mxu0 %v134
    %v202 = vpop.f32.mrb[0].mxu0
    %v203 = vadd.f32 0.0, %v202
    %v204 = vpop.f32.mrb[0].mxu0
    %205 = vdwg.mxu0
    %v206 = vmul.f32 %v203, 14.285714
    %v207 = vld [vmem:[#allocation2] sm:$0xff]
    %vm208 = vcmask 64512
    %v209 = vsel %vm208, %v133, -inf
    %210 = vmax.xlane.f32.xlu0 %v209
    %v211 = vpop.xlane.xlu0 %210
    %v212 = vmax.f32 %v207, %v211
    %v213 = vsub.f32 %v207, %v212
    %v214 = vmul.f32 %v213, 1.442695
    %v215 = vpow.pop %v214
    %v216 = vld [vmem:[#allocation3] sm:$0xff]
    %v217 = vmul.f32 %v215, %v216
    %219 = vset.pattern.permute.xlu0 0
    %220 = vperm.xlu0 %219, %v212
    %v221 = vpop.permute.xlu0 %220
    %v223 = vsub.f32 %v133, %v221
    %v224 = vmul.f32 %v223, 1.442695
    %v225 = vpow.pop %v224
    %v226 = vsel %vm208, %v225, 0.0
    %227 = vadd.xlane.f32.xlu0 %v226
    %v228 = vpop.xlane.xlu0 %227
    %v229 = vadd.f32 %v217, %v228
    %vm230 = vcmask 7168
    %231 = vst.msk [vmem:[#allocation3] sm:$0xff] %vm230, %v229
    %232 = vst.msk [vmem:[#allocation2] sm:$0xff] %vm230, %v212
    %v233 = vld [vmem:[#allocation4] sm:$0xff]
    %v234 = vsel %vm208, %v206, -inf
    %235 = vmax.xlane.f32.xlu0 %v234
    %v236 = vpop.xlane.xlu0 %235
    %v237 = vmax.f32 %v233, %v236
    %v238 = vsub.f32 %v233, %v237
    %v239 = vmul.f32 %v238, 1.442695
    %v240 = vpow.pop %v239
    %v241 = vld [vmem:[#allocation5] sm:$0xff]
    %v242 = vmul.f32 %v240, %v241
    %244 = vset.pattern.permute.xlu0 0
    %245 = vperm.xlu0 %244, %v237
    %v246 = vpop.permute.xlu0 %245
    %v248 = vsub.f32 %v206, %v246
    %v249 = vmul.f32 %v248, 1.442695
    %v250 = vpow.pop %v249
    %v251 = vsel %vm208, %v250, 0.0
    %252 = vadd.xlane.f32.xlu0 %v251
    %v253 = vpop.xlane.xlu0 %252
    %v254 = vadd.f32 %v242, %v253
    %255 = vst.msk [vmem:[#allocation5] sm:$0xff] %vm230, %v254
    %256 = vst.msk [vmem:[#allocation4] sm:$0xff] %vm230, %v237
    // Predicated region
    $region34: #{tpu_custom_call.1} parent=1 // pred_check
      %p257 = pneg %p52
    $region35: #{tpu_custom_call.1} parent=1 // pred_check_branch
      %259 = sbr.rel (%p257) target = $region37
    $region36: #{tpu_custom_call.1} parent=1 // pred_region
      %v260 = vld [vmem:[#allocation2] sm:$0xff]
      %v261 = vld [vmem:[#allocation3] sm:$0xff]
      %v262 = vlog2.pop %v261
      %v263 = vmul.f32 %v262, 0.6931472
      %v264 = vadd.f32 %v260, %v263
      %v265 = vld [vmem:[#allocation4] sm:$0xff]
      %v266 = vld [vmem:[#allocation5] sm:$0xff]
      %v267 = vlog2.pop %v266
      %v268 = vmul.f32 %v267, 0.6931472
      %v269 = vadd.f32 %v265, %v268
      %v270 = vld [vmem:[#allocation6] sm:$0xff]
      %v271 = vld [vmem:[#allocation8] sm:$0xff]
      %v272 = vmul.f32 %v270, %v271
      %273 = vadd.xlane.f32.xlu0 %v272
      %v274 = vpop.xlane.xlu0 %273
      %v275 = vmul.f32 %v274, 14.285714
      %v276 = vadd.f32 %v264, %v269
      %v277 = vmul.f32 %v275, 2.0
      %v278 = vsub.f32 %v276, %v277
      %279 = vst.msk [vmem:[%s4] sm:$0xff] %vm230, %v278
    $region37: #{tpu_custom_call.1} parent=1 // pred_fallthru
      _
    // Predicated region
    $region38: #{tpu_custom_call.1} parent=1 // pred_check
      _
    $region39: #{tpu_custom_call.1} parent=1 // pred_check_branch
      %281 = sbr.rel (0) target = $region41
    $region40: #{tpu_custom_call.1} parent=1 // pred_region
      _
    $region41: #{tpu_custom_call.1} parent=1 // pred_fallthru
      _
    // Predicated region
    $region42: #{tpu_custom_call.1} parent=1 // pred_check
      _
    $region43: #{tpu_custom_call.1} parent=1 // pred_check_branch
      %283 = sbr.rel (0) target = $region45
    $region44: #{tpu_custom_call.1} parent=1 // pred_region
      _
    $region45: #{tpu_custom_call.1} parent=1 // pred_fallthru
      _
    %284 = vsyncpa [#allocation7], 1
    %285 = vsyncpa [#allocation9], 1

</llo_original>
